<compile_context>
chip_gen: v5e
topology: v5e:2x2
jax: 0.10.0
libtpu: 0.0.40
codegen_flags: <defaults>
</compile_context>

<pallas_src>
import jax
import jax.numpy as jnp
from jax.experimental import pallas as pl
from jax.experimental.pallas import tpu as pltpu


def _group_linear_kernel(x_ref, w_ref, o_ref):
    # x_ref: (TB, G*din)   w_ref: (1, G*din, G*dout)   o_ref: (TB, G*dout)
    o_ref[...] = jnp.dot(
        x_ref[...], w_ref[0], preferred_element_type=jnp.float32
    ).astype(o_ref.dtype)


def _pick_group_size(num_blocks, din, dout):
    """Smallest divisor G of num_blocks making both G*din and G*dout lane
    aligned (multiples of 128).  Fall back to the full block axis, which is
    always a legal block dim (equal to the full array extent)."""
    for g in range(1, num_blocks):
        if num_blocks % g:
            continue
        if (g * din) % 128 == 0 and (g * dout) % 128 == 0:
            return g
    return num_blocks


def _pick_batch_tile(batch, gdin, gdout, itemsize, budget_bytes=12 << 20):
    """Largest batch tile (multiple of 8, dividing batch) whose x/y tiles stay
    under a per-tile VMEM budget (leaves double-buffering headroom on v7x)."""
    if batch % 8 != 0:
        return batch  # full extent -> always a legal block dim
    for tb in (512, 256, 128, 64, 32, 16, 8):
        if batch % tb == 0 and tb * (gdin + gdout) * itemsize <= budget_bytes:
            return tb
    return 8


def group_linear_layer(x, w):
    """x: (batch, num_blocks, din), w: (num_blocks, din, dout)
    -> (batch, num_blocks, dout)."""
    batch, num_blocks, din = x.shape
    nb_w, din_w, dout = w.shape
    assert nb_w == num_blocks and din_w == din

    G = _pick_group_size(num_blocks, din, dout)
    num_groups = num_blocks // G
    gdin, gdout = G * din, G * dout

    # Trailing-dim reshape: no data movement (replaces the old jnp.transpose glue).
    x2 = x.reshape(batch, num_blocks * din)

    # Pack G consecutive expert weights into a block-diagonal (gdin, gdout) tile
    # per group.  When G == 1 (dout/din already lane-dense) this is just `w`.
    # In a real module this packing would be done once at parameter-setup time,
    # not per forward call.
    if G == 1:
        w_bd = w
    else:
        w_g = w.reshape(num_groups, G, din, dout)
        eye = jnp.eye(G, dtype=w.dtype)
        w_bd = jnp.einsum("ngdo,gh->ngdho", w_g, eye).reshape(
            num_groups, gdin, gdout
        )

    itemsize = jnp.dtype(x.dtype).itemsize
    tb = _pick_batch_tile(batch, gdin, gdout, itemsize)
    num_batch_tiles = batch // tb

    # Explicit VMEM budget: double-buffered x/w/y tiles plus margin, capped at
    # v7x's 64 MiB physical VMEM.
    tile_bytes = (tb * gdin + gdin * gdout + tb * gdout) * itemsize
    vmem_limit = int(min(max(4 * tile_bytes, 4 << 20), 64 << 20))

    y2 = pl.pallas_call(
        _group_linear_kernel,
        out_shape=jax.ShapeDtypeStruct((batch, num_blocks * dout), x.dtype),
        grid_spec=pltpu.PrefetchScalarGridSpec(
            num_scalar_prefetch=0,
            # Group axis outer, batch-tile axis inner: the packed-weight block
            # index is constant across the inner axis -> fetched once per group.
            grid=(num_groups, num_batch_tiles),
            in_specs=[
                pl.BlockSpec((tb, gdin), lambda g, i: (i, g)),
                pl.BlockSpec((1, gdin, gdout), lambda g, i: (g, 0, 0)),
            ],
            out_specs=pl.BlockSpec((tb, gdout), lambda g, i: (i, g)),
        ),
        compiler_params=pltpu.CompilerParams(
            dimension_semantics=("parallel", "parallel"),
            vmem_limit_bytes=vmem_limit,
        ),
    )(x2, w_bd)

    # Trailing-dim reshape back: no data movement.
    return y2.reshape(batch, num_blocks, dout)


if __name__ == "__main__":
    # Small shapes consistent with the module's forward.
    batch, num_blocks, din, dout = 8, 4, 32, 32

    key = jax.random.PRNGKey(0)
    kx, kw = jax.random.split(key)

    x = jax.random.normal(kx, (batch, num_blocks, din), dtype=jnp.float32)
    # Deterministic parameter init matching 0.01 * randn(num_blocks, din, dout).
    w = 0.01 * jax.random.normal(kw, (num_blocks, din, dout), dtype=jnp.float32)

    y = jax.block_until_ready(group_linear_layer(x, w))

    # Reference check in plain JAX (same math as the torch.bmm path).
    y_ref = jnp.einsum("bnd,ndo->bno", x, w)
    assert y.shape == (batch, num_blocks, dout)
    assert jnp.allclose(y, y_ref, atol=2e-5, rtol=2e-5), float(
        jnp.max(jnp.abs(y - y_ref))
    )

    print("KERNEL_OK")
</pallas_src>

<mosaic_0001>
module attributes {stable_mosaic.version = 11 : i64} {
  func.func @_group_linear_kernel(%arg0: i32, %arg1: i32, %arg2: memref<8x128xf32, #tpu.memory_space<vmem>>, %arg3: memref<1x128x128xf32, #tpu.memory_space<vmem>>, %arg4: memref<8x128xf32, #tpu.memory_space<vmem>>) attributes {dimension_semantics = [#tpu.dimension_semantics<parallel>, #tpu.dimension_semantics<parallel>], iteration_bounds = array<i64: 1, 1>, scalar_prefetch = 0 : i64, scratch_operands = 0 : i64, tpu.core_type = #tpu.core_type<tc>, window_params = [{transform_indices = @transform_0, window_bounds = array<i64: 8, 128>}, {transform_indices = @transform_1, window_bounds = array<i64: 1, 128, 128>}, {transform_indices = @transform_2, window_bounds = array<i64: 8, 128>}]} {
    %c0 = arith.constant 0 : index
    %c0_0 = arith.constant 0 : index
    %0 = vector.load %arg2[%c0, %c0_0] : memref<8x128xf32, #tpu.memory_space<vmem>>, vector<8x128xf32>
    %c0_1 = arith.constant 0 : index
    %c0_2 = arith.constant 0 : index
    %c0_3 = arith.constant 0 : index
    %1 = vector.load %arg3[%c0_1, %c0_2, %c0_3] : memref<1x128x128xf32, #tpu.memory_space<vmem>>, vector<1x128x128xf32>
    %2 = vector.shape_cast %1 : vector<1x128x128xf32> to vector<128x128xf32>
    %cst = arith.constant dense<0.000000e+00> : vector<8x128xf32>
    %3 = tpu.matmul %0, %2, %cst {dimension_numbers = #tpu.dot_dimension_numbers<[1], [0], [0], [1], [0, 0, 1, 1], [], []>} : vector<8x128xf32>, vector<128x128xf32>, vector<8x128xf32> -> vector<8x128xf32>
    %c0_4 = arith.constant 0 : index
    %c0_5 = arith.constant 0 : index
    %4 = vector.load %arg4[%c0_4, %c0_5] : memref<8x128xf32, #tpu.memory_space<vmem>>, vector<8x128xf32>
    tpu.vector_store %arg4[%c0_4, %c0_5], %3 {strides = array<i32>} : memref<8x128xf32, #tpu.memory_space<vmem>>, vector<8x128xf32>,
    return
  }
  func.func @transform_0(%arg0: i32, %arg1: i32) -> (i32, i32) {
    %c0_i32 = arith.constant 0 : i32
    return %arg1, %arg0 : i32, i32
  }
  func.func @transform_1(%arg0: i32, %arg1: i32) -> (i32, i32, i32) {
    %c0_i32 = arith.constant 0 : i32
    %c0_i32_0 = arith.constant 0 : i32
    %c0_i32_1 = arith.constant 0 : i32
    return %arg0, %c0_i32, %c0_i32_0 : i32, i32, i32
  }
  func.func @transform_2(%arg0: i32, %arg1: i32) -> (i32, i32) {
    %c0_i32 = arith.constant 0 : i32
    return %arg1, %arg0 : i32, i32
  }
}

</mosaic_0001>

<llo_original>
// kernel: tpu_custom_call.1
$region0: #{tpu_custom_call.1}
  #allocation0 [shape = 'u32[]', space=smem, size = 0x4, offset = 0x4, fixed_abs, tag = 'smem constant byte address 0x4 - core index']
  #allocation1 [shape = 'u32[72,128]{1,0:T(1,128)}', space=vmem, size = 0x9000, scoped, tag = 'internal scratch']
  %s0 = inlined_call_operand.hbm [shape: f32[8,128], index: 0, kind: input, shape index: {}]
  %s1 = inlined_call_operand.hbm [shape: f32[1,128,128], index: 1, kind: input, shape index: {}]
  %s2 = inlined_call_operand.hbm [shape: f32[8,128], index: 2, kind: output, shape index: {}]
  %s3 = sld [smem:[#allocation0]]
  $region26: #{tpu_custom_call.1} parent=0
    _
  %s5 = ssub.s32 1, %s3
  %s6 = scalar_select 0, %s5, %s3
  $region1: #{tpu_custom_call.1} parent=0
    #allocation2 [shape = 'u8[4096]{0}', space=vmem, size = 0x1000, scoped, tag = 'input window, operand 0, single buffered']
    #allocation3 [shape = 's32[1]{0}', space=sflag, size = 0x4, scoped, tag = 'scoped memory for tpu_custom_call.1']
    #allocation4 [shape = 's32[1]{0}', space=sflag, size = 0x4, scoped, tag = 'scoped memory for tpu_custom_call.1']
    #allocation5 [shape = 'u8[65536]{0}', space=vmem, size = 0x10000, scoped, tag = 'input window, operand 1, single buffered']
    #allocation6 [shape = 's32[1]{0}', space=sflag, size = 0x4, scoped, tag = 'scoped memory for tpu_custom_call.1']
    #allocation7 [shape = 'u8[4096]{0}', space=vmem, size = 0x1000, scoped, tag = 'output window, operand 0, single buffered']
    %7 = vsyncpa [#allocation3], 0
    %8 = vsyncpa [#allocation6], 0
    %9 = vsyncpa [#allocation4], 0
    // Predicated region
    $region2: #{tpu_custom_call.1} parent=1 // pred_check
      _
    $region3: #{tpu_custom_call.1} parent=1 // pred_check_branch
      %11 = sbr.rel (0) target = $region5
    $region4: #{tpu_custom_call.1} parent=1 // pred_region
      %13 = vsyncadd [#allocation3], 0
      %s15 = sshll.u32 %s0, 4
      %s16 = int_to_ptr.hbm [resolvable:$true] %s15
      %s17 = sshll.u32 [#allocation2], 4
      %s18 = int_to_ptr.vmem [resolvable:$true] %s17
      %20 = dma.hbm_to_vmem [thread:$0]  %s16, 128, %s18, [#allocation3]
    $region5: #{tpu_custom_call.1} parent=1 // pred_fallthru
      _
    // Predicated region
    $region6: #{tpu_custom_call.1} parent=1 // pred_check
      _
    $region7: #{tpu_custom_call.1} parent=1 // pred_check_branch
      %22 = sbr.rel (0) target = $region9
    $region8: #{tpu_custom_call.1} parent=1 // pred_region
      %24 = vsyncadd [#allocation6], 0
      %s25 = sshll.u32 %s1, 4
      %s26 = int_to_ptr.hbm [resolvable:$true] %s25
      %s27 = sshll.u32 [#allocation5], 4
      %s28 = int_to_ptr.vmem [resolvable:$true] %s27
      %33 = dma.hbm_to_vmem [thread:$0]  %s26, 2048, %s28, [#allocation6], 128, 128, 8
    $region9: #{tpu_custom_call.1} parent=1 // pred_fallthru
      _
    // Predicated region
    $region10: #{tpu_custom_call.1} parent=1 // pred_check
      _
    $region11: #{tpu_custom_call.1} parent=1 // pred_check_branch
      %35 = sbr.rel (0) target = $region13
    $region12: #{tpu_custom_call.1} parent=1 // pred_region
      %37 = dma.done [#allocation3], 128
    $region13: #{tpu_custom_call.1} parent=1 // pred_fallthru
      _
    // Predicated region
    $region14: #{tpu_custom_call.1} parent=1 // pred_check
      _
    $region15: #{tpu_custom_call.1} parent=1 // pred_check_branch
      %39 = sbr.rel (0) target = $region17
    $region16: #{tpu_custom_call.1} parent=1 // pred_region
      %41 = dma.done [#allocation6], 2048
    $region17: #{tpu_custom_call.1} parent=1 // pred_fallthru
      _
    %v42 = vld [vmem:[#allocation2] sm:$0xff]
    %v43 = vld [vmem:[#allocation5] sm:$0xff]
    %v44 = vld [vmem:[#allocation5 + $0x8] sm:$0xff]
    %v45 = vld [vmem:[#allocation5 + $0x10] sm:$0xff]
    %v46 = vld [vmem:[#allocation5 + $0x18] sm:$0xff]
    %v47 = vld [vmem:[#allocation5 + $0x20] sm:$0xff]
    %v48 = vld [vmem:[#allocation5 + $0x28] sm:$0xff]
    %v49 = vld [vmem:[#allocation5 + $0x30] sm:$0xff]
    %v50 = vld [vmem:[#allocation5 + $0x38] sm:$0xff]
    %v51 = vld [vmem:[#allocation5 + $0x40] sm:$0xff]
    %v52 = vld [vmem:[#allocation5 + $0x48] sm:$0xff]
    %v53 = vld [vmem:[#allocation5 + $0x50] sm:$0xff]
    %v54 = vld [vmem:[#allocation5 + $0x58] sm:$0xff]
    %v55 = vld [vmem:[#allocation5 + $0x60] sm:$0xff]
    %v56 = vld [vmem:[#allocation5 + $0x68] sm:$0xff]
    %v57 = vld [vmem:[#allocation5 + $0x70] sm:$0xff]
    %v58 = vld [vmem:[#allocation5 + $0x78] sm:$0xff]
    %59 = vmatpush.msra.mxu0 %v58
    %60 = vmatpush.msra.mxu0 %v57
    %61 = vmatpush.msra.mxu0 %v56
    %62 = vmatpush.msra.mxu0 %v55
    %63 = vmatpush.msra.mxu0 %v54
    %64 = vmatpush.msra.mxu0 %v53
    %65 = vmatpush.msra.mxu0 %v52
    %66 = vmatpush.msra.mxu0 %v51
    %67 = vmatpush.msra.mxu0 %v50
    %68 = vmatpush.msra.mxu0 %v49
    %69 = vmatpush.msra.mxu0 %v48
    %70 = vmatpush.msra.mxu0 %v47
    %71 = vmatpush.msra.mxu0 %v46
    %72 = vmatpush.msra.mxu0 %v45
    %73 = vmatpush.msra.mxu0 %v44
    %74 = vmatpush.msra.mxu0 %v43
    %75 = vmatmul.f32.gmra.mxu0 %v42
    %v76 = vpop.f32.mrf.mxu0
    %v77 = vadd.f32 0.0, %v76
    %78 = vdwg.mxu0
    %79 = vst [vmem:[#allocation7] sm:$0xff] %v77
    // Predicated region
    $region18: #{tpu_custom_call.1} parent=1 // pred_check
      _
    $region19: #{tpu_custom_call.1} parent=1 // pred_check_branch
      %81 = sbr.rel (0) target = $region21
    $region20: #{tpu_custom_call.1} parent=1 // pred_region
      %83 = vsyncadd [#allocation4], 0
      %s85 = sshll.u32 [#allocation7], 4
      %s86 = int_to_ptr.vmem [resolvable:$true] %s85
      %s87 = sshll.u32 %s2, 4
      %s88 = int_to_ptr.hbm [resolvable:$true] %s87
      %90 = dma.vmem_to_hbm [thread:$0]  %s86, 128, %s88, [#allocation4]
    $region21: #{tpu_custom_call.1} parent=1 // pred_fallthru
      _
    // Predicated region
    $region22: #{tpu_custom_call.1} parent=1 // pred_check
      _
    $region23: #{tpu_custom_call.1} parent=1 // pred_check_branch
      %92 = sbr.rel (0) target = $region25
    $region24: #{tpu_custom_call.1} parent=1 // pred_region
      %94 = dma.done [#allocation4], 128
    $region25: #{tpu_custom_call.1} parent=1 // pred_fallthru
      _
    %95 = vsyncpa [#allocation3], 1
    %96 = vsyncpa [#allocation6], 1
    %97 = vsyncpa [#allocation4], 1

</llo_original>
